<compile_context>
chip_gen: v7x
topology: tpu7x:2x2x1
jax: 0.10.0
libtpu: 0.0.40
codegen_flags: <defaults>
</compile_context>

<pallas_src>
import jax
import jax.numpy as jnp
from jax import lax
from jax.experimental import pallas as pl
from jax.experimental.pallas import tpu as pltpu


# ----------------------------------------------------------------------------
# Kernel
# ----------------------------------------------------------------------------
def _ffn_kernel(x_ref, w1_ref, b1_ref, w2_ref, b2_ref, w3t_ref, b3_ref, o_ref):
    """Fused Linear->ReLU->(BN folded)->Linear->ReLU->(BN folded)->Linear."""
    f32 = jnp.float32

    x = x_ref[...]
    if x.dtype != w1_ref.dtype:          # only cast if the MXU needs it
        x = x.astype(w1_ref.dtype)

    # Block 1: Linear -> ReLU   (BN1 already folded into W2/b2).
    h = jnp.dot(x, w1_ref[...], preferred_element_type=f32)
    h = jnp.maximum(h + b1_ref[...], 0.0)          # f32 elementwise

    # Block 2: Linear -> ReLU   (BN2 already folded into W3/b3).
    h2 = h.astype(w2_ref.dtype) if h.dtype != w2_ref.dtype else h
    h = jnp.dot(h2, w2_ref[...], preferred_element_type=f32)
    h = jnp.maximum(h + b2_ref[...], 0.0)          # f32 elementwise

    # Final projection, computed transposed so the batch dim sits in the lane
    # dimension -> lane-dense unmasked stores, no 128x-padded writeback.
    h3 = h.astype(w3t_ref.dtype) if h.dtype != w3t_ref.dtype else h
    y_t = lax.dot_general(w3t_ref[...], h3, (((1,), (1,)), ((), ())),
                          preferred_element_type=f32)      # (out, block_b)
    o_ref[...] = (y_t + b3_ref[...]).astype(o_ref.dtype)


# ----------------------------------------------------------------------------
# Wrapper helpers
# ----------------------------------------------------------------------------
def _choose_block_b(batch, requested):
    if requested is not None:
        return requested
    # Prefer big tiles (>=256 rows lands near roofline), but keep >=2 grid
    # steps so both v7x TensorCores get work.  Only 128-multiples are offered
    # so the lane-dim (block_b) of the transposed output block stays legal.
    for cand in (1024, 512, 256, 128):
        if batch % cand == 0 and batch // cand >= 2:
            return cand
    return batch            # single full-batch tile (block == full array dims)


def _resident_spec(shape):
    """Constant-index (VMEM-resident) operand; single-buffered if supported."""
    nd = len(shape)
    index_map = lambda i: (0,) * nd
    try:
        return pl.BlockSpec(shape, index_map, pipeline_mode=pl.Buffered(1))
    except Exception:  # older jax without pipeline_mode / Buffered(1)
        return pl.BlockSpec(shape, index_map)


def _vmem_limit_bytes(resident_bytes, x_tile_bytes, out_tile_bytes,
                      block_b, hidden):
    # resident weights (single copy) + double-buffered streamed tiles
    # + a few f32 activation temporaries + headroom.
    act = 6 * block_b * hidden * 4
    want = resident_bytes + 2 * (x_tile_bytes + out_tile_bytes) + act + (4 << 20)
    try:
        phys = int(pltpu.get_tpu_info().vmem_capacity_bytes)
    except Exception:
        phys = 64 * 1024 * 1024          # conservative: v7x has 64 MiB / TC
    cap = int(phys * 0.75)               # ~48 MiB on v7x, ~96 MiB on v5e/v6e
    return int(min(max(want, 32 << 20), cap))


# ----------------------------------------------------------------------------
# Public entry point
# ----------------------------------------------------------------------------
def feed_forward_predictor(x, w1, b1, bn1, w2, b2, bn2, w3, b3,
                           *, eps=1e-5, block_b=None, weight_dtype=None):
    """Fused forward of FeedForwardPredictor.

    x: (B, Din).  w*: (in, out) layout.  b*: (out,).
    bn*: (4, H) rows = [gamma, beta, running_mean, running_var].
    weight_dtype: optional dtype for the matmul weights (e.g. jnp.bfloat16 on
      v6e/v7x); folding and elementwise math stay in f32.
    Returns (B, output_size) in float32.
    """
    B, Din = x.shape
    H = w1.shape[1]
    out_size = w3.shape[1]
    f32 = jnp.float32

    # ---- Fold inference BatchNorm into the *following* Linear (exact, f32).
    def _fold(bn, w_next, b_next):
        gamma = bn[0].astype(f32)
        beta = bn[1].astype(f32)
        mean = bn[2].astype(f32)
        var = bn[3].astype(f32)
        scale = gamma * lax.rsqrt(var + f32(eps))
        offset = beta - mean * scale
        w_nf = w_next.astype(f32)
        return w_nf * scale[:, None], b_next.astype(f32) + offset @ w_nf

    w2f, b2f = _fold(bn1, w2, b2)
    w3f, b3f = _fold(bn2, w3, b3)

    wdt = weight_dtype if weight_dtype is not None else w1.dtype
    w1k = w1.astype(wdt)                      # (Din, H)
    w2k = w2f.astype(wdt)                     # (H, H)
    w3tk = w3f.T.astype(wdt)                  # (out_size, H) -- transposed
    b1k = b1.astype(f32).reshape(1, H)
    b2k = b2f.reshape(1, H)
    b3k = b3f.reshape(out_size, 1)

    block_b = _choose_block_b(B, block_b)
    assert B % block_b == 0, (B, block_b)
    grid = (B // block_b,)

    resident_bytes = sum(int(a.size) * a.dtype.itemsize
                         for a in (w1k, b1k, w2k, b2k, w3tk, b3k))
    x_tile_bytes = block_b * Din * x.dtype.itemsize
    out_tile_bytes = out_size * block_b * 4
    vmem_limit = _vmem_limit_bytes(resident_bytes, x_tile_bytes,
                                   out_tile_bytes, block_b, H)

    flops = 2 * B * (Din * H + H * H + H * out_size)
    bytes_accessed = (x.size * x.dtype.itemsize + resident_bytes
                      + B * out_size * 4)

    out_t = pl.pallas_call(
        _ffn_kernel,
        out_shape=jax.ShapeDtypeStruct((out_size, B), jnp.float32),
        grid_spec=pltpu.PrefetchScalarGridSpec(
            num_scalar_prefetch=0,
            grid=grid,
            in_specs=[
                pl.BlockSpec((block_b, Din), lambda i: (i, 0)),  # x (streamed)
                _resident_spec((Din, H)),                        # w1
                _resident_spec((1, H)),                          # b1
                _resident_spec((H, H)),                          # w2 (BN1 folded)
                _resident_spec((1, H)),                          # b2 (BN1 folded)
                _resident_spec((out_size, H)),                   # w3^T (BN2 folded)
                _resident_spec((out_size, 1)),                   # b3 (BN2 folded)
            ],
            out_specs=pl.BlockSpec((out_size, block_b), lambda i: (0, i)),
        ),
        compiler_params=pltpu.CompilerParams(
            dimension_semantics=("parallel",),
            vmem_limit_bytes=vmem_limit,
        ),
        cost_estimate=pl.CostEstimate(
            flops=flops, transcendentals=0, bytes_accessed=bytes_accessed),
    )(x, w1k, b1k, w2k, b2k, w3tk, b3k)

    return out_t.T                              # (B, out_size)


# ----------------------------------------------------------------------------
# Pure-JAX reference + self-test
# ----------------------------------------------------------------------------
def _reference(x, w1, b1, bn1, w2, b2, bn2, w3, b3, eps=1e-5):
    def bn(h, p):
        g, be, m, v = p[0], p[1], p[2], p[3]
        return (h - m) / jnp.sqrt(v + eps) * g + be

    h = jnp.maximum(x @ w1 + b1, 0.0)
    h = bn(h, bn1)
    h = jnp.maximum(h @ w2 + b2, 0.0)
    h = bn(h, bn2)
    return h @ w3 + b3


if __name__ == "__main__":
    key = jax.random.PRNGKey(0)
    ks = jax.random.split(key, 16)

    B, Din, H, Dout = 256, 64, 128, 1

    x = jax.random.normal(ks[0], (B, Din), dtype=jnp.float32)

    # Layer 1
    w1 = jax.random.normal(ks[1], (Din, H), dtype=jnp.float32) * 0.1
    b1 = jax.random.normal(ks[2], (H,), dtype=jnp.float32) * 0.1
    g1 = 1.0 + 0.1 * jax.random.normal(ks[3], (H,), dtype=jnp.float32)
    be1 = 0.1 * jax.random.normal(ks[4], (H,), dtype=jnp.float32)
    m1 = 0.1 * jax.random.normal(ks[5], (H,), dtype=jnp.float32)
    v1 = 0.5 + jax.random.uniform(ks[6], (H,), dtype=jnp.float32)
    bn1 = jnp.stack([g1, be1, m1, v1], axis=0)

    # Layer 2
    w2 = jax.random.normal(ks[7], (H, H), dtype=jnp.float32) * 0.1
    b2 = jax.random.normal(ks[8], (H,), dtype=jnp.float32) * 0.1
    g2 = 1.0 + 0.1 * jax.random.normal(ks[9], (H,), dtype=jnp.float32)
    be2 = 0.1 * jax.random.normal(ks[10], (H,), dtype=jnp.float32)
    m2 = 0.1 * jax.random.normal(ks[11], (H,), dtype=jnp.float32)
    v2 = 0.5 + jax.random.uniform(ks[12], (H,), dtype=jnp.float32)
    bn2 = jnp.stack([g2, be2, m2, v2], axis=0)

    # Output layer
    w3 = jax.random.normal(ks[13], (H, Dout), dtype=jnp.float32) * 0.1
    b3 = jax.random.normal(ks[14], (Dout,), dtype=jnp.float32) * 0.1

    out = feed_forward_predictor(x, w1, b1, bn1, w2, b2, bn2, w3, b3)
    out = jax.block_until_ready(out)

    ref = _reference(x, w1, b1, bn1, w2, b2, bn2, w3, b3)
    assert out.shape == (B, Dout), out.shape
    max_err = float(jnp.max(jnp.abs(out - ref)))
    assert jnp.allclose(out, ref, rtol=1e-3, atol=1e-3), max_err

    print("KERNEL_OK")
</pallas_src>

<mosaic_0001>
module attributes {stable_mosaic.version = 11 : i64} {
  func.func @_ffn_kernel(%arg0: i32, %arg1: memref<128x64xf32, #tpu.memory_space<vmem>>, %arg2: memref<64x128xf32, #tpu.memory_space<vmem>>, %arg3: memref<1x128xf32, #tpu.memory_space<vmem>>, %arg4: memref<128x128xf32, #tpu.memory_space<vmem>>, %arg5: memref<1x128xf32, #tpu.memory_space<vmem>>, %arg6: memref<1x128xf32, #tpu.memory_space<vmem>>, %arg7: memref<1x1xf32, #tpu.memory_space<vmem>>, %arg8: memref<1x128xf32, #tpu.memory_space<vmem>>) attributes {dimension_semantics = [#tpu.dimension_semantics<parallel>], iteration_bounds = array<i64: 2>, scalar_prefetch = 0 : i64, scratch_operands = 0 : i64, tpu.core_type = #tpu.core_type<tc>, window_params = [{transform_indices = @transform_0, window_bounds = array<i64: 128, 64>}, {pipeline_mode = #tpu.pipeline_mode<synchronous>, transform_indices = @transform_1, window_bounds = array<i64: 64, 128>}, {pipeline_mode = #tpu.pipeline_mode<synchronous>, transform_indices = @transform_2, window_bounds = array<i64: 1, 128>}, {pipeline_mode = #tpu.pipeline_mode<synchronous>, transform_indices = @transform_3, window_bounds = array<i64: 128, 128>}, {pipeline_mode = #tpu.pipeline_mode<synchronous>, transform_indices = @transform_4, window_bounds = array<i64: 1, 128>}, {pipeline_mode = #tpu.pipeline_mode<synchronous>, transform_indices = @transform_5, window_bounds = array<i64: 1, 128>}, {pipeline_mode = #tpu.pipeline_mode<synchronous>, transform_indices = @transform_6, window_bounds = array<i64: 1, 1>}, {transform_indices = @transform_7, window_bounds = array<i64: 1, 128>}]} {
    %c0 = arith.constant 0 : index
    %c0_0 = arith.constant 0 : index
    %0 = vector.load %arg1[%c0, %c0_0] : memref<128x64xf32, #tpu.memory_space<vmem>>, vector<128x64xf32>
    %c0_1 = arith.constant 0 : index
    %c0_2 = arith.constant 0 : index
    %1 = vector.load %arg2[%c0_1, %c0_2] : memref<64x128xf32, #tpu.memory_space<vmem>>, vector<64x128xf32>
    %cst = arith.constant dense<0.000000e+00> : vector<128x128xf32>
    %2 = tpu.matmul %0, %1, %cst {dimension_numbers = #tpu.dot_dimension_numbers<[1], [0], [0], [1], [0, 0, 1, 1], [], []>} : vector<128x64xf32>, vector<64x128xf32>, vector<128x128xf32> -> vector<128x128xf32>
    %c0_3 = arith.constant 0 : index
    %c0_4 = arith.constant 0 : index
    %3 = vector.load %arg3[%c0_3, %c0_4] : memref<1x128xf32, #tpu.memory_space<vmem>>, vector<1x128xf32>
    %4 = vector.broadcast %3 : vector<1x128xf32> to vector<128x128xf32>
    %5 = arith.addf %2, %4 : vector<128x128xf32>
    %cst_5 = arith.constant 0.000000e+00 : f32
    %6 = vector.broadcast %cst_5 : f32 to vector<128x128xf32>
    %7 = arith.maximumf %5, %6 : vector<128x128xf32>
    %c0_6 = arith.constant 0 : index
    %c0_7 = arith.constant 0 : index
    %8 = vector.load %arg4[%c0_6, %c0_7] : memref<128x128xf32, #tpu.memory_space<vmem>>, vector<128x128xf32>
    %cst_8 = arith.constant dense<0.000000e+00> : vector<128x128xf32>
    %9 = tpu.matmul %7, %8, %cst_8 {dimension_numbers = #tpu.dot_dimension_numbers<[1], [0], [0], [1], [0, 0, 1, 1], [], []>} : vector<128x128xf32>, vector<128x128xf32>, vector<128x128xf32> -> vector<128x128xf32>
    %c0_9 = arith.constant 0 : index
    %c0_10 = arith.constant 0 : index
    %10 = vector.load %arg5[%c0_9, %c0_10] : memref<1x128xf32, #tpu.memory_space<vmem>>, vector<1x128xf32>
    %11 = vector.broadcast %10 : vector<1x128xf32> to vector<128x128xf32>
    %12 = arith.addf %9, %11 : vector<128x128xf32>
    %cst_11 = arith.constant 0.000000e+00 : f32
    %13 = vector.broadcast %cst_11 : f32 to vector<128x128xf32>
    %14 = arith.maximumf %12, %13 : vector<128x128xf32>
    %c0_12 = arith.constant 0 : index
    %c0_13 = arith.constant 0 : index
    %15 = vector.load %arg6[%c0_12, %c0_13] : memref<1x128xf32, #tpu.memory_space<vmem>>, vector<1x128xf32>
    %cst_14 = arith.constant dense<0.000000e+00> : vector<1x128xf32>
    %16 = tpu.matmul %15, %14, %cst_14 {dimension_numbers = #tpu.dot_dimension_numbers<[1], [1], [0], [0], [0, 0, 1, 0], [], []>} : vector<1x128xf32>, vector<128x128xf32>, vector<1x128xf32> -> vector<1x128xf32>
    %c0_15 = arith.constant 0 : index
    %c0_16 = arith.constant 0 : index
    %17 = vector.load %arg7[%c0_15, %c0_16] : memref<1x1xf32, #tpu.memory_space<vmem>>, vector<1x1xf32>
    %18 = vector.broadcast %17 : vector<1x1xf32> to vector<1x128xf32>
    %19 = arith.addf %16, %18 : vector<1x128xf32>
    %c0_17 = arith.constant 0 : index
    %c0_18 = arith.constant 0 : index
    %20 = vector.load %arg8[%c0_17, %c0_18] : memref<1x128xf32, #tpu.memory_space<vmem>>, vector<1x128xf32>
    tpu.vector_store %arg8[%c0_17, %c0_18], %19 {strides = array<i32>} : memref<1x128xf32, #tpu.memory_space<vmem>>, vector<1x128xf32>,
    return
  }
  func.func @transform_0(%arg0: i32) -> (i32, i32) {
    %c0_i32 = arith.constant 0 : i32
    %c0_i32_0 = arith.constant 0 : i32
    return %arg0, %c0_i32 : i32, i32
  }
  func.func @transform_1(%arg0: i32) -> (i32, i32) {
    %c0_i32 = arith.constant 0 : i32
    %c0_i32_0 = arith.constant 0 : i32
    %c0_i32_1 = arith.constant 0 : i32
    return %c0_i32, %c0_i32_0 : i32, i32
  }
  func.func @transform_2(%arg0: i32) -> (i32, i32) {
    %c0_i32 = arith.constant 0 : i32
    %c0_i32_0 = arith.constant 0 : i32
    %c0_i32_1 = arith.constant 0 : i32
    return %c0_i32, %c0_i32_0 : i32, i32
  }
  func.func @transform_3(%arg0: i32) -> (i32, i32) {
    %c0_i32 = arith.constant 0 : i32
    %c0_i32_0 = arith.constant 0 : i32
    %c0_i32_1 = arith.constant 0 : i32
    return %c0_i32, %c0_i32_0 : i32, i32
  }
  func.func @transform_4(%arg0: i32) -> (i32, i32) {
    %c0_i32 = arith.constant 0 : i32
    %c0_i32_0 = arith.constant 0 : i32
    %c0_i32_1 = arith.constant 0 : i32
    return %c0_i32, %c0_i32_0 : i32, i32
  }
  func.func @transform_5(%arg0: i32) -> (i32, i32) {
    %c0_i32 = arith.constant 0 : i32
    %c0_i32_0 = arith.constant 0 : i32
    %c0_i32_1 = arith.constant 0 : i32
    return %c0_i32, %c0_i32_0 : i32, i32
  }
  func.func @transform_6(%arg0: i32) -> (i32, i32) {
    %c0_i32 = arith.constant 0 : i32
    %c0_i32_0 = arith.constant 0 : i32
    %c0_i32_1 = arith.constant 0 : i32
    return %c0_i32, %c0_i32_0 : i32, i32
  }
  func.func @transform_7(%arg0: i32) -> (i32, i32) {
    %c0_i32 = arith.constant 0 : i32
    %c0_i32_0 = arith.constant 0 : i32
    return %c0_i32, %arg0 : i32, i32
  }
}

</mosaic_0001>

<llo_original>
// kernel: tpu_custom_call.1
$region0: #{tpu_custom_call.1}
  #allocation0 [shape = 'u32[]', space=smem, size = 0x4, offset = 0x4, fixed_abs, tag = 'smem constant byte address 0x4 - core index']
  #allocation1 [shape = 'u32[144,128]{1,0:T(1,128)}', space=vmem, size = 0x12000, scoped, tag = 'internal scratch']
  #allocation2 [shape = 'f32[1,1]{1,0:T(1,128)S(1)}', space=vmem, size = 0x200, scoped, tag = 'scoped memory for tpu_custom_call.1']
  %s0 = inlined_call_operand.vmem [shape: f32[256,64], index: 0, kind: input, shape index: {}]
  %s1 = inlined_call_operand.vmem [shape: f32[64,128], index: 1, kind: input, shape index: {}]
  %s2 = inlined_call_operand.vmem [shape: f32[1,128], index: 2, kind: input, shape index: {}]
  %s3 = inlined_call_operand.vmem [shape: f32[128,128], index: 3, kind: input, shape index: {}]
  %s4 = inlined_call_operand.vmem [shape: f32[1,128], index: 4, kind: input, shape index: {}]
  %s5 = inlined_call_operand.vmem [shape: f32[1,128], index: 5, kind: input, shape index: {}]
  %s6 = inlined_call_operand.<no memory space> [shape: f32[1,1], index: 6, kind: input, shape index: {}]
  %s7 = inlined_call_operand.hbm [shape: f32[1,256], index: 7, kind: output, shape index: {}]
  %s8 = sld [smem:[#allocation0]]
  $region61: #{tpu_custom_call.1} parent=0
    _
  %s10 = ssub.s32 1, %s8
  %s11 = scalar_select 0, %s10, %s8
  %v12 = vstv %s6
  %13 = vst [vmem:[#allocation2] sm:$0x1] %v12
  $region1: #{tpu_custom_call.1} parent=0
    #allocation3 [shape = 'u8[1024]{0}', space=vmem, size = 0x400, scoped, tag = 'output window, operand 0']
    #allocation4 [shape = 's32[2]{0}', space=sflag, size = 0x8, scoped, tag = 'scoped memory for tpu_custom_call.1']
    %14 = vsyncpa [#allocation4], 0
    %s15 = scalar_lea.sflag [#allocation4], 1
    %16 = vsyncpa %s15, 0
    loop: start=0, step=1, limit=4
    $region2: #{tpu_custom_call.1} parent=1 // loop_pre_header
      _
    $region3: #{tpu_custom_call.1} parent=1 // loop_header
      %s18 = sphi 0, %s22
      %p19 = scmp.ge.s32.totalorder %s18, 4
      %s28 = sphi 0, %s30
      %s31 = sphi 0, %s28
      %s32 = sphi 0, %s31
      %s48 = sphi 0, %s32
      %s52 = sphi 0, %s52
      %s54 = sphi 0, %s52
      %s55 = sphi 0, %s54
      %s69 = sphi 0, %s55
      %s73 = sphi 0, %s73
      %s75 = sphi 0, %s73
      %s76 = sphi 0, %s75
      %s90 = sphi 0, %s76
      %s94 = sphi 0, %s94
      %s96 = sphi 0, %s94
      %s97 = sphi 0, %s96
      %s111 = sphi 0, %s97
      %s115 = sphi 0, %s115
      %s117 = sphi 0, %s115
      %s118 = sphi 0, %s117
      %s132 = sphi 0, %s118
      %s136 = sphi 0, %s136
      %s138 = sphi 0, %s136
      %s139 = sphi 0, %s138
      %s153 = sphi 0, %s139
      %s157 = sphi 0, %s157
      %s159 = sphi 0, %s157
      %s160 = sphi 0, %s159
      %s174 = sphi 0, %s160
      %s180 = sphi 0, %s182
      %s183 = sphi 0, %s180
      %s184 = sphi 0, %s183
      %s200 = sphi 0, %s184
    $region4: #{tpu_custom_call.1} parent=1 // loop_header_branch
      %21 = sbr.rel (%p19) target = $region8
    $region5: #{tpu_custom_call.1} parent=1 // loop_body
      %s23 = ssub.s32 %s18, 1
      %s24 = ssub.s32 %s18, 2
      %s25 = sadd.s32 %s18, 1
      %s26 = ssub.s32 %s18, %s25
      %p27 = scmp.eq.s32.totalorder %s26, 0
      %s29 = sadd.s32 %s28, 1
      %s30 = scalar_select %p27, %s28, %s29
      %p33 = pneg %p27
      %p34 = scmp.eq.s32.totalorder %s18, 1
      %p35 = por %p33, %p34
      %p36 = scmp.ne.s32.totalorder %s28, %s31
      %p37 = scmp.eq.s32.totalorder %s18, 0
      %p38 = por %p36, %p37
      %p39 = scmp.ne.s32.totalorder %s28, %s31
      %p40 = scmp.eq.s32.totalorder %s23, 1
      %p41 = por %p39, %p40
      %p42 = scmp.ne.s32.totalorder %s31, %s32
      %p43 = scmp.eq.s32.totalorder %s23, 0
      %p44 = por %p42, %p43
      %p45 = scmp.ne.s32.totalorder %s31, %s32
      %p46 = scmp.eq.s32.totalorder %s24, 1
      %p47 = por %p45, %p46
      %p49 = scmp.ne.s32.totalorder %s32, %s48
      %p50 = scmp.eq.s32.totalorder %s24, 0
      %p51 = por %p49, %p50
      %s53 = sadd.s32 %s52, 1
      %p56 = scmp.eq.s32.totalorder %s18, 1
      %p57 = scmp.ne.s32.totalorder %s52, %s54
      %p58 = scmp.eq.s32.totalorder %s18, 0
      %p59 = por %p57, %p58
      %p60 = scmp.ne.s32.totalorder %s52, %s54
      %p61 = scmp.eq.s32.totalorder %s23, 1
      %p62 = por %p60, %p61
      %p63 = scmp.ne.s32.totalorder %s54, %s55
      %p64 = scmp.eq.s32.totalorder %s23, 0
      %p65 = por %p63, %p64
      %p66 = scmp.ne.s32.totalorder %s54, %s55
      %p67 = scmp.eq.s32.totalorder %s24, 1
      %p68 = por %p66, %p67
      %p70 = scmp.ne.s32.totalorder %s55, %s69
      %p71 = scmp.eq.s32.totalorder %s24, 0
      %p72 = por %p70, %p71
      %s74 = sadd.s32 %s73, 1
      %p77 = scmp.eq.s32.totalorder %s18, 1
      %p78 = scmp.ne.s32.totalorder %s73, %s75
      %p79 = scmp.eq.s32.totalorder %s18, 0
      %p80 = por %p78, %p79
      %p81 = scmp.ne.s32.totalorder %s73, %s75
      %p82 = scmp.eq.s32.totalorder %s23, 1
      %p83 = por %p81, %p82
      %p84 = scmp.ne.s32.totalorder %s75, %s76
      %p85 = scmp.eq.s32.totalorder %s23, 0
      %p86 = por %p84, %p85
      %p87 = scmp.ne.s32.totalorder %s75, %s76
      %p88 = scmp.eq.s32.totalorder %s24, 1
      %p89 = por %p87, %p88
      %p91 = scmp.ne.s32.totalorder %s76, %s90
      %p92 = scmp.eq.s32.totalorder %s24, 0
      %p93 = por %p91, %p92
      %s95 = sadd.s32 %s94, 1
      %p98 = scmp.eq.s32.totalorder %s18, 1
      %p99 = scmp.ne.s32.totalorder %s94, %s96
      %p100 = scmp.eq.s32.totalorder %s18, 0
      %p101 = por %p99, %p100
      %p102 = scmp.ne.s32.totalorder %s94, %s96
      %p103 = scmp.eq.s32.totalorder %s23, 1
      %p104 = por %p102, %p103
      %p105 = scmp.ne.s32.totalorder %s96, %s97
      %p106 = scmp.eq.s32.totalorder %s23, 0
      %p107 = por %p105, %p106
      %p108 = scmp.ne.s32.totalorder %s96, %s97
      %p109 = scmp.eq.s32.totalorder %s24, 1
      %p110 = por %p108, %p109
      %p112 = scmp.ne.s32.totalorder %s97, %s111
      %p113 = scmp.eq.s32.totalorder %s24, 0
      %p114 = por %p112, %p113
      %s116 = sadd.s32 %s115, 1
      %p119 = scmp.eq.s32.totalorder %s18, 1
      %p120 = scmp.ne.s32.totalorder %s115, %s117
      %p121 = scmp.eq.s32.totalorder %s18, 0
      %p122 = por %p120, %p121
      %p123 = scmp.ne.s32.totalorder %s115, %s117
      %p124 = scmp.eq.s32.totalorder %s23, 1
      %p125 = por %p123, %p124
      %p126 = scmp.ne.s32.totalorder %s117, %s118
      %p127 = scmp.eq.s32.totalorder %s23, 0
      %p128 = por %p126, %p127
      %p129 = scmp.ne.s32.totalorder %s117, %s118
      %p130 = scmp.eq.s32.totalorder %s24, 1
      %p131 = por %p129, %p130
      %p133 = scmp.ne.s32.totalorder %s118, %s132
      %p134 = scmp.eq.s32.totalorder %s24, 0
      %p135 = por %p133, %p134
      %s137 = sadd.s32 %s136, 1
      %p140 = scmp.eq.s32.totalorder %s18, 1
      %p141 = scmp.ne.s32.totalorder %s136, %s138
      %p142 = scmp.eq.s32.totalorder %s18, 0
      %p143 = por %p141, %p142
      %p144 = scmp.ne.s32.totalorder %s136, %s138
      %p145 = scmp.eq.s32.totalorder %s23, 1
      %p146 = por %p144, %p145
      %p147 = scmp.ne.s32.totalorder %s138, %s139
      %p148 = scmp.eq.s32.totalorder %s23, 0
      %p149 = por %p147, %p148
      %p150 = scmp.ne.s32.totalorder %s138, %s139
      %p151 = scmp.eq.s32.totalorder %s24, 1
      %p152 = por %p150, %p151
      %p154 = scmp.ne.s32.totalorder %s139, %s153
      %p155 = scmp.eq.s32.totalorder %s24, 0
      %p156 = por %p154, %p155
      %s158 = sadd.s32 %s157, 1
      %p161 = scmp.eq.s32.totalorder %s18, 1
      %p162 = scmp.ne.s32.totalorder %s157, %s159
      %p163 = scmp.eq.s32.totalorder %s18, 0
      %p164 = por %p162, %p163
      %p165 = scmp.ne.s32.totalorder %s157, %s159
      %p166 = scmp.eq.s32.totalorder %s23, 1
      %p167 = por %p165, %p166
      %p168 = scmp.ne.s32.totalorder %s159, %s160
      %p169 = scmp.eq.s32.totalorder %s23, 0
      %p170 = por %p168, %p169
      %p171 = scmp.ne.s32.totalorder %s159, %s160
      %p172 = scmp.eq.s32.totalorder %s24, 1
      %p173 = por %p171, %p172
      %p175 = scmp.ne.s32.totalorder %s160, %s174
      %p176 = scmp.eq.s32.totalorder %s24, 0
      %p177 = por %p175, %p176
      %s178 = ssub.s32 %s18, %s25
      %p179 = scmp.eq.s32.totalorder %s178, 0
      %s181 = sadd.s32 %s180, 1
      %s182 = scalar_select %p179, %s180, %s181
      %p185 = pneg %p179
      %p186 = scmp.eq.s32.totalorder %s18, 1
      %p187 = por %p185, %p186
      %p188 = scmp.ne.s32.totalorder %s180, %s183
      %p189 = scmp.eq.s32.totalorder %s18, 0
      %p190 = por %p188, %p189
      %p191 = scmp.ne.s32.totalorder %s180, %s183
      %p192 = scmp.eq.s32.totalorder %s23, 1
      %p193 = por %p191, %p192
      %p194 = scmp.ne.s32.totalorder %s183, %s184
      %p195 = scmp.eq.s32.totalorder %s23, 0
      %p196 = por %p194, %p195
      %p197 = scmp.ne.s32.totalorder %s183, %s184
      %p198 = scmp.eq.s32.totalorder %s24, 1
      %p199 = por %p197, %p198
      %p201 = scmp.ne.s32.totalorder %s184, %s200
      %p202 = scmp.eq.s32.totalorder %s24, 0
      %p203 = por %p201, %p202
      %p204 = scmp.le.s32.totalorder 1, %s18
      %p205 = scmp.lt.s32.totalorder %s18, 3
      %p206 = pnand %p204, %p205
      %p207 = pneg %p206
      // Predicated region
      $region9: #{tpu_custom_call.1} parent=5 // pred_check
        _
      $region10: #{tpu_custom_call.1} parent=5 // pred_check_branch
        %209 = sbr.rel (%p206) target = $region12
      $region11: #{tpu_custom_call.1} parent=5 // pred_region
        %s210 = ssub.s32 %s18, 1
        // Predicated region
        $region13: #{tpu_custom_call.1} parent=11 // pred_check
          %p211 = pneg %p65
        $region14: #{tpu_custom_call.1} parent=11 // pred_check_branch
          %213 = sbr.rel (%p211) target = $region16
        $region15: #{tpu_custom_call.1} parent=11 // pred_region
          _
        $region16: #{tpu_custom_call.1} parent=11 // pred_fallthru
          _
        // Predicated region
        $region17: #{tpu_custom_call.1} parent=11 // pred_check
          %p214 = pneg %p86
        $region18: #{tpu_custom_call.1} parent=11 // pred_check_branch
          %216 = sbr.rel (%p214) target = $region20
        $region19: #{tpu_custom_call.1} parent=11 // pred_region
          _
        $region20: #{tpu_custom_call.1} parent=11 // pred_fallthru
          _
        // Predicated region
        $region21: #{tpu_custom_call.1} parent=11 // pred_check
          %p217 = pneg %p107
        $region22: #{tpu_custom_call.1} parent=11 // pred_check_branch
          %219 = sbr.rel (%p217) target = $region24
        $region23: #{tpu_custom_call.1} parent=11 // pred_region
          _
        $region24: #{tpu_custom_call.1} parent=11 // pred_fallthru
          _
        // Predicated region
        $region25: #{tpu_custom_call.1} parent=11 // pred_check
          %p220 = pneg %p128
        $region26: #{tpu_custom_call.1} parent=11 // pred_check_branch
          %222 = sbr.rel (%p220) target = $region28
        $region27: #{tpu_custom_call.1} parent=11 // pred_region
          _
        $region28: #{tpu_custom_call.1} parent=11 // pred_fallthru
          _
        // Predicated region
        $region29: #{tpu_custom_call.1} parent=11 // pred_check
          %p223 = pneg %p149
        $region30: #{tpu_custom_call.1} parent=11 // pred_check_branch
          %225 = sbr.rel (%p223) target = $region32
        $region31: #{tpu_custom_call.1} parent=11 // pred_region
          _
        $region32: #{tpu_custom_call.1} parent=11 // pred_fallthru
          _
        // Predicated region
        $region33: #{tpu_custom_call.1} parent=11 // pred_check
          %p226 = pneg %p170
        $region34: #{tpu_custom_call.1} parent=11 // pred_check_branch
          %228 = sbr.rel (%p226) target = $region36
        $region35: #{tpu_custom_call.1} parent=11 // pred_region
          _
        $region36: #{tpu_custom_call.1} parent=11 // pred_fallthru
          _
      $region12: #{tpu_custom_call.1} parent=5 // pred_fallthru
        _
      %p229 = scmp.lt.s32.totalorder %s18, 2
      // Predicated region
      $region37: #{tpu_custom_call.1} parent=5 // pred_check
        %p230 = pneg %p229
      $region38: #{tpu_custom_call.1} parent=5 // pred_check_branch
        %232 = sbr.rel (%p230) target = $region40
      $region39: #{tpu_custom_call.1} parent=5 // pred_region
        // Predicated region
        $region41: #{tpu_custom_call.1} parent=39 // pred_check
          %p233 = pneg %p38
        $region42: #{tpu_custom_call.1} parent=39 // pred_check_branch
          %235 = sbr.rel (%p233) target = $region44
        $region43: #{tpu_custom_call.1} parent=39 // pred_region
          %s236 = smul.u32 16, %s18
          %p237 = scmp.lt.s32.totalorder %s236, 31
          %s238 = scalar_select %p237, %s236, 31
          %s239 = smul.addr %s238, 8
          %s240 = scalar_lea.vmem %s0, %s239
          %s241 = smul.u32 16, %s18
        $region44: #{tpu_custom_call.1} parent=39 // pred_fallthru
          _
      $region40: #{tpu_custom_call.1} parent=5 // pred_fallthru
        _
      %p242 = scmp.le.s32.totalorder 1, %s18
      %p243 = scmp.lt.s32.totalorder %s18, 3
      %p244 = pnand %p242, %p243
      %p245 = pneg %p244
      // Predicated region
      $region45: #{tpu_custom_call.1} parent=5 // pred_check
        _
      $region46: #{tpu_custom_call.1} parent=5 // pred_check_branch
        %247 = sbr.rel (%p244) target = $region48
      $region47: #{tpu_custom_call.1} parent=5 // pred_region
        %s248 = ssub.s32 %s18, 1
        %s249 = smul.u32 16, %s23
        %p250 = scmp.lt.s32.totalorder %s249, 31
        %s251 = scalar_select %p250, %s249, 31
        %s252 = smul.addr %s251, 8
        %s253 = scalar_lea.vmem %s0, %s252
        %p254 = pneg %p44
        %p255 = pneg %p41
        %p256 = pneg %p65
        %p257 = pneg %p62
        %p258 = pneg %p86
        %p259 = pneg %p83
        %p260 = pneg %p107
        %p261 = pneg %p104
        %p262 = pneg %p128
        %p263 = pneg %p125
        %p264 = pneg %p149
        %p265 = pneg %p146
        %p266 = pneg %p170
        %p267 = pneg %p167
        %p268 = pneg %p196
        %p269 = pneg %p193
        %s270 = sand.u32 %s183, 1
        %s271 = scalar_lea.sflag [#allocation4], %s270
        %s272 = sand.u32 %s183, 1
        %s273 = scalar_lea.vmem [#allocation3], %s272
        %s274 = smul.u32 16, %s23
        %p275 = scmp.lt.s32.totalorder %s274, 31
        %s276 = scalar_select %p275, %s274, 31
        %s277 = smul.addr %s276, 8
        %s278 = scalar_lea.vmem %s0, %s277
        %s279 = smul.u32 16, %s23
        %v280 = vld [vmem:[%s278] sm:$0xff]
        %v281 = vld [vmem:[%s278 + $0x8] sm:$0xff]
        %v282 = vld [vmem:[%s278 + $0x10] sm:$0xff]
        %v283 = vld [vmem:[%s278 + $0x18] sm:$0xff]
        %v284 = vld [vmem:[%s278 + $0x20] sm:$0xff]
        %v285 = vld [vmem:[%s278 + $0x28] sm:$0xff]
        %v286 = vld [vmem:[%s278 + $0x30] sm:$0xff]
        %v287 = vld [vmem:[%s278 + $0x38] sm:$0xff]
        %v288 = vld [vmem:[%s278 + $0x40] sm:$0xff]
        %v289 = vld [vmem:[%s278 + $0x48] sm:$0xff]
        %v290 = vld [vmem:[%s278 + $0x50] sm:$0xff]
        %v291 = vld [vmem:[%s278 + $0x58] sm:$0xff]
        %v292 = vld [vmem:[%s278 + $0x60] sm:$0xff]
        %v293 = vld [vmem:[%s278 + $0x68] sm:$0xff]
        %v294 = vld [vmem:[%s278 + $0x70] sm:$0xff]
        %v295 = vld [vmem:[%s278 + $0x78] sm:$0xff]
        %v296 = vld [vmem:[%s1] sm:$0xff]
        %v297 = vld [vmem:[%s1 + $0x8] sm:$0xff]
        %v298 = vld [vmem:[%s1 + $0x10] sm:$0xff]
        %v299 = vld [vmem:[%s1 + $0x18] sm:$0xff]
        %v300 = vld [vmem:[%s1 + $0x20] sm:$0xff]
        %v301 = vld [vmem:[%s1 + $0x28] sm:$0xff]
        %v302 = vld [vmem:[%s1 + $0x30] sm:$0xff]
        %v303 = vld [vmem:[%s1 + $0x38] sm:$0xff]
        %v304 = vld [vmem:[%s2] sm:$0x1]
        %v306 = vlaneseq
        %v307 = vshrl.u32 %v306, 7
        %v308 = vsub.s32 0, %v307
        %v309 = vrot.slane %v304, %v308
        %vm311 = vcmask 523264
        %v313 = vsel %vm311, %v280, 0
        %v316 = vsel %vm311, %v281, 0
        %v319 = vsel %vm311, %v282, 0
        %v322 = vsel %vm311, %v283, 0
        %v325 = vsel %vm311, %v284, 0
        %v328 = vsel %vm311, %v285, 0
        %v331 = vsel %vm311, %v286, 0
        %v334 = vsel %vm311, %v287, 0
        %v337 = vsel %vm311, %v288, 0
        %v340 = vsel %vm311, %v289, 0
        %v343 = vsel %vm311, %v290, 0
        %v346 = vsel %vm311, %v291, 0
        %v349 = vsel %vm311, %v292, 0
        %v352 = vsel %vm311, %v293, 0
        %v355 = vsel %vm311, %v294, 0
        %v358 = vsel %vm311, %v295, 0
        %360 = vmatprep.subr.mxu0 0.0
        %361 = vmatpush1.msra.mxu0 %v296
        %362 = vmatprep.subr.mxu0 0.0
        %363 = vmatpush1.msra.mxu0 %v297
        %364 = vmatprep.subr.mxu0 0.0
        %365 = vmatpush1.msra.mxu0 %v298
        %366 = vmatprep.subr.mxu0 0.0
        %367 = vmatpush1.msra.mxu0 %v299
        %368 = vmatprep.subr.mxu0 0.0
        %369 = vmatpush1.msra.mxu0 %v300
        %370 = vmatprep.subr.mxu0 0.0
        %371 = vmatpush1.msra.mxu0 %v301
        %372 = vmatprep.subr.mxu0 0.0
        %373 = vmatpush1.msra.mxu0 %v302
        %374 = vmatprep.subr.mxu0 0.0
        %375 = vmatpush1.msra.mxu0 %v303
        %376 = vmatprep.subr.mxu0 0.0
        %377 = vmatpush1.msra.mxu0 0.0
        %378 = vmatprep.subr.mxu0 0.0
        %379 = vmatpush1.msra.mxu0 0.0
        %380 = vmatprep.subr.mxu0 0.0
        %381 = vmatpush1.msra.mxu0 0.0
        %382 = vmatprep.subr.mxu0 0.0
        %383 = vmatpush1.msra.mxu0 0.0
        %384 = vmatprep.subr.mxu0 0.0
        %385 = vmatpush1.msra.mxu0 0.0
        %386 = vmatprep.subr.mxu0 0.0
        %387 = vmatpush1.msra.mxu0 0.0
        %388 = vmatprep.subr.mxu0 0.0
        %389 = vmatpush1.msra.mxu0 0.0
        %390 = vmatprep.subr.mxu0 0.0
        %391 = vmatpush1.msra.mxu0 0.0
        %392 = vmatprep.subr.mxu0 0.0
        %393 = vmatpush1.msra.mxu0 0.0
        %394 = vmatprep.subr.mxu0 0.0
        %395 = vmatpush1.msra.mxu0 0.0
        %396 = vmatprep.subr.mxu0 0.0
        %397 = vmatpush1.msra.mxu0 0.0
        %398 = vmatprep.subr.mxu0 0.0
        %399 = vmatpush1.msra.mxu0 0.0
        %400 = vmatprep.subr.mxu0 0.0
        %401 = vmatpush1.msra.mxu0 0.0
        %402 = vmatprep.subr.mxu0 0.0
        %403 = vmatpush1.msra.mxu0 0.0
        %404 = vmatprep.subr.mxu0 0.0
        %405 = vmatpush1.msra.mxu0 0.0
        %406 = vmatprep.subr.mxu0 0.0
        %407 = vmatpush1.msra.mxu0 0.0
        %408 = vmatprep.subr.mxu0 0.0
        %409 = vmatpush1.msra.mxu0 0.0
        %410 = vmatprep.subr.mxu0 0.0
        %411 = vmatpush1.msra.mxu0 0.0
        %412 = vmatprep.subr.mxu0 0.0
        %413 = vmatpush1.msra.mxu0 0.0
        %414 = vmatprep.subr.mxu0 0.0
        %415 = vmatpush1.msra.mxu0 0.0
        %416 = vmatprep.subr.mxu0 0.0
        %417 = vmatpush1.msra.mxu0 0.0
        %418 = vmatprep.subr.mxu0 0.0
        %419 = vmatpush1.msra.mxu0 0.0
        %420 = vmatprep.subr.mxu0 0.0
        %421 = vmatpush1.msra.mxu0 0.0
        %422 = vmatprep.subr.mxu0 0.0
        %423 = vmatpush1.msra.mxu0 0.0
        %424 = vmatprep.mubr.f32.mxu0 0.0
        %425 = vmatmul.mubr.f32.gmra.mrb[0].mxu0 %v313
        %v426 = vpop.f32.mrb[0].mxu0
        %v427 = vadd.f32 %v309, %v426
        %v428 = vpop.f32.mrb[0].mxu0
        %429 = vmatprep.mubr.f32.mxu0 0.0
        %430 = vmatmul.mubr.f32.gmra.mrb[0].mxu0 %v316
        %v431 = vpop.f32.mrb[0].mxu0
        %v432 = vadd.f32 %v309, %v431
        %v433 = vpop.f32.mrb[0].mxu0
        %434 = vmatprep.mubr.f32.mxu0 0.0
        %435 = vmatmul.mubr.f32.gmra.mrb[0].mxu0 %v319
        %v436 = vpop.f32.mrb[0].mxu0
        %v437 = vadd.f32 %v309, %v436
        %v438 = vpop.f32.mrb[0].mxu0
        %439 = vmatprep.mubr.f32.mxu0 0.0
        %440 = vmatmul.mubr.f32.gmra.mrb[0].mxu0 %v322
        %v441 = vpop.f32.mrb[0].mxu0
        %v442 = vadd.f32 %v309, %v441
        %v443 = vpop.f32.mrb[0].mxu0
        %444 = vmatprep.mubr.f32.mxu0 0.0
        %445 = vmatmul.mubr.f32.gmra.mrb[0].mxu0 %v325
        %v446 = vpop.f32.mrb[0].mxu0
        %v447 = vadd.f32 %v309, %v446
        %v448 = vpop.f32.mrb[0].mxu0
        %449 = vmatprep.mubr.f32.mxu0 0.0
        %450 = vmatmul.mubr.f32.gmra.mrb[0].mxu0 %v328
        %v451 = vpop.f32.mrb[0].mxu0
        %v452 = vadd.f32 %v309, %v451
        %v453 = vpop.f32.mrb[0].mxu0
        %454 = vmatprep.mubr.f32.mxu0 0.0
        %455 = vmatmul.mubr.f32.gmra.mrb[0].mxu0 %v331
        %v456 = vpop.f32.mrb[0].mxu0
        %v457 = vadd.f32 %v309, %v456
        %v458 = vpop.f32.mrb[0].mxu0
        %459 = vmatprep.mubr.f32.mxu0 0.0
        %460 = vmatmul.mubr.f32.gmra.mrb[0].mxu0 %v334
        %v461 = vpop.f32.mrb[0].mxu0
        %v462 = vadd.f32 %v309, %v461
        %v463 = vpop.f32.mrb[0].mxu0
        %464 = vmatprep.mubr.f32.mxu0 0.0
        %465 = vmatmul.mubr.f32.gmra.mrb[0].mxu0 %v337
        %v466 = vpop.f32.mrb[0].mxu0
        %v467 = vadd.f32 %v309, %v466
        %v468 = vpop.f32.mrb[0].mxu0
        %469 = vmatprep.mubr.f32.mxu0 0.0
        %470 = vmatmul.mubr.f32.gmra.mrb[0].mxu0 %v340
        %v471 = vpop.f32.mrb[0].mxu0
        %v472 = vadd.f32 %v309, %v471
        %v473 = vpop.f32.mrb[0].mxu0
        %474 = vmatprep.mubr.f32.mxu0 0.0
        %475 = vmatmul.mubr.f32.gmra.mrb[0].mxu0 %v343
        %v476 = vpop.f32.mrb[0].mxu0
        %v477 = vadd.f32 %v309, %v476
        %v478 = vpop.f32.mrb[0].mxu0
        %479 = vmatprep.mubr.f32.mxu0 0.0
        %480 = vmatmul.mubr.f32.gmra.mrb[0].mxu0 %v346
        %v481 = vpop.f32.mrb[0].mxu0
        %v482 = vadd.f32 %v309, %v481
        %v483 = vpop.f32.mrb[0].mxu0
        %484 = vmatprep.mubr.f32.mxu0 0.0
        %485 = vmatmul.mubr.f32.gmra.mrb[0].mxu0 %v349
        %v486 = vpop.f32.mrb[0].mxu0
        %v487 = vadd.f32 %v309, %v486
        %v488 = vpop.f32.mrb[0].mxu0
        %489 = vmatprep.mubr.f32.mxu0 0.0
        %490 = vmatmul.mubr.f32.gmra.mrb[0].mxu0 %v352
        %v491 = vpop.f32.mrb[0].mxu0
        %v492 = vadd.f32 %v309, %v491
        %v493 = vpop.f32.mrb[0].mxu0
        %494 = vmatprep.mubr.f32.mxu0 0.0
        %495 = vmatmul.mubr.f32.gmra.mrb[0].mxu0 %v355
        %v496 = vpop.f32.mrb[0].mxu0
        %v497 = vadd.f32 %v309, %v496
        %v498 = vpop.f32.mrb[0].mxu0
        %499 = vmatprep.mubr.f32.mxu0 0.0
        %500 = vmatmul.mubr.f32.gmra.mrb[0].mxu0 %v358
        %v501 = vpop.f32.mrb[0].mxu0
        %v502 = vadd.f32 %v309, %v501
        %v503 = vpop.f32.mrb[0].mxu0
        %504 = vdwg.mxu0
        %v505 = vmax.f32 %v427, 0.0
        %v506 = vmax.f32 %v432, 0.0
        %v507 = vmax.f32 %v437, 0.0
        %v508 = vmax.f32 %v442, 0.0
        %v509 = vmax.f32 %v447, 0.0
        %v510 = vmax.f32 %v452, 0.0
        %v511 = vmax.f32 %v457, 0.0
        %v512 = vmax.f32 %v462, 0.0
        %v513 = vmax.f32 %v467, 0.0
        %v514 = vmax.f32 %v472, 0.0
        %v515 = vmax.f32 %v477, 0.0
        %v516 = vmax.f32 %v482, 0.0
        %v517 = vmax.f32 %v487, 0.0
        %v518 = vmax.f32 %v492, 0.0
        %v519 = vmax.f32 %v497, 0.0
        %v520 = vmax.f32 %v502, 0.0
        %v521 = vld [vmem:[%s3] sm:$0xff]
        %v522 = vld [vmem:[%s3 + $0x8] sm:$0xff]
        %v523 = vld [vmem:[%s3 + $0x10] sm:$0xff]
        %v524 = vld [vmem:[%s3 + $0x18] sm:$0xff]
        %v525 = vld [vmem:[%s3 + $0x20] sm:$0xff]
        %v526 = vld [vmem:[%s3 + $0x28] sm:$0xff]
        %v527 = vld [vmem:[%s3 + $0x30] sm:$0xff]
        %v528 = vld [vmem:[%s3 + $0x38] sm:$0xff]
        %v529 = vld [vmem:[%s3 + $0x40] sm:$0xff]
        %v530 = vld [vmem:[%s3 + $0x48] sm:$0xff]
        %v531 = vld [vmem:[%s3 + $0x50] sm:$0xff]
        %v532 = vld [vmem:[%s3 + $0x58] sm:$0xff]
        %v533 = vld [vmem:[%s3 + $0x60] sm:$0xff]
        %v534 = vld [vmem:[%s3 + $0x68] sm:$0xff]
        %v535 = vld [vmem:[%s3 + $0x70] sm:$0xff]
        %v536 = vld [vmem:[%s3 + $0x78] sm:$0xff]
        %v537 = vld [vmem:[%s4] sm:$0x1]
        %v539 = vlaneseq
        %v540 = vshrl.u32 %v539, 7
        %v541 = vsub.s32 0, %v540
        %v542 = vrot.slane %v537, %v541
        %544 = vmatprep.subr.mxu0 0.0
        %545 = vmatpush1.msra.mxu0 %v521
        %546 = vmatprep.subr.mxu0 0.0
        %547 = vmatpush1.msra.mxu0 %v522
        %548 = vmatprep.subr.mxu0 0.0
        %549 = vmatpush1.msra.mxu0 %v523
        %550 = vmatprep.subr.mxu0 0.0
        %551 = vmatpush1.msra.mxu0 %v524
        %552 = vmatprep.subr.mxu0 0.0
        %553 = vmatpush1.msra.mxu0 %v525
        %554 = vmatprep.subr.mxu0 0.0
        %555 = vmatpush1.msra.mxu0 %v526
        %556 = vmatprep.subr.mxu0 0.0
        %557 = vmatpush1.msra.mxu0 %v527
        %558 = vmatprep.subr.mxu0 0.0
        %559 = vmatpush1.msra.mxu0 %v528
        %560 = vmatprep.subr.mxu0 0.0
        %561 = vmatpush1.msra.mxu0 %v529
        %562 = vmatprep.subr.mxu0 0.0
        %563 = vmatpush1.msra.mxu0 %v530
        %564 = vmatprep.subr.mxu0 0.0
        %565 = vmatpush1.msra.mxu0 %v531
        %566 = vmatprep.subr.mxu0 0.0
        %567 = vmatpush1.msra.mxu0 %v532
        %568 = vmatprep.subr.mxu0 0.0
        %569 = vmatpush1.msra.mxu0 %v533
        %570 = vmatprep.subr.mxu0 0.0
        %571 = vmatpush1.msra.mxu0 %v534
        %572 = vmatprep.subr.mxu0 0.0
        %573 = vmatpush1.msra.mxu0 %v535
        %574 = vmatprep.subr.mxu0 0.0
        %575 = vmatpush1.msra.mxu0 %v536
        %576 = vmatprep.subr.mxu0 0.0
        %577 = vmatpush1.msra.mxu0 0.0
        %578 = vmatprep.subr.mxu0 0.0
        %579 = vmatpush1.msra.mxu0 0.0
        %580 = vmatprep.subr.mxu0 0.0
        %581 = vmatpush1.msra.mxu0 0.0
        %582 = vmatprep.subr.mxu0 0.0
        %583 = vmatpush1.msra.mxu0 0.0
        %584 = vmatprep.subr.mxu0 0.0
        %585 = vmatpush1.msra.mxu0 0.0
        %586 = vmatprep.subr.mxu0 0.0
        %587 = vmatpush1.msra.mxu0 0.0
        %588 = vmatprep.subr.mxu0 0.0
        %589 = vmatpush1.msra.mxu0 0.0
        %590 = vmatprep.subr.mxu0 0.0
        %591 = vmatpush1.msra.mxu0 0.0
        %592 = vmatprep.subr.mxu0 0.0
        %593 = vmatpush1.msra.mxu0 0.0
        %594 = vmatprep.subr.mxu0 0.0
        %595 = vmatpush1.msra.mxu0 0.0
        %596 = vmatprep.subr.mxu0 0.0
        %597 = vmatpush1.msra.mxu0 0.0
        %598 = vmatprep.subr.mxu0 0.0
        %599 = vmatpush1.msra.mxu0 0.0
        %600 = vmatprep.subr.mxu0 0.0
        %601 = vmatpush1.msra.mxu0 0.0
        %602 = vmatprep.subr.mxu0 0.0
        %603 = vmatpush1.msra.mxu0 0.0
        %604 = vmatprep.subr.mxu0 0.0
        %605 = vmatpush1.msra.mxu0 0.0
        %606 = vmatprep.subr.mxu0 0.0
        %607 = vmatpush1.msra.mxu0 0.0
        %608 = vmatprep.mubr.f32.mxu0 0.0
        %609 = vmatmul.mubr.f32.gmra.mrb[0].mxu0 %v505
        %v610 = vpop.f32.mrb[0].mxu0
        %v611 = vadd.f32 %v542, %v610
        %v612 = vpop.f32.mrb[0].mxu0
        %613 = vmatprep.mubr.f32.mxu0 0.0
        %614 = vmatmul.mubr.f32.gmra.mrb[0].mxu0 %v506
        %v615 = vpop.f32.mrb[0].mxu0
        %v616 = vadd.f32 %v542, %v615
        %v617 = vpop.f32.mrb[0].mxu0
        %618 = vmatprep.mubr.f32.mxu0 0.0
        %619 = vmatmul.mubr.f32.gmra.mrb[0].mxu0 %v507
        %v620 = vpop.f32.mrb[0].mxu0
        %v621 = vadd.f32 %v542, %v620
        %v622 = vpop.f32.mrb[0].mxu0
        %623 = vmatprep.mubr.f32.mxu0 0.0
        %624 = vmatmul.mubr.f32.gmra.mrb[0].mxu0 %v508
        %v625 = vpop.f32.mrb[0].mxu0
        %v626 = vadd.f32 %v542, %v625
        %v627 = vpop.f32.mrb[0].mxu0
        %628 = vmatprep.mubr.f32.mxu0 0.0
        %629 = vmatmul.mubr.f32.gmra.mrb[0].mxu0 %v509
        %v630 = vpop.f32.mrb[0].mxu0
        %v631 = vadd.f32 %v542, %v630
        %v632 = vpop.f32.mrb[0].mxu0
        %633 = vmatprep.mubr.f32.mxu0 0.0
        %634 = vmatmul.mubr.f32.gmra.mrb[0].mxu0 %v510
        %v635 = vpop.f32.mrb[0].mxu0
        %v636 = vadd.f32 %v542, %v635
        %v637 = vpop.f32.mrb[0].mxu0
        %638 = vmatprep.mubr.f32.mxu0 0.0
        %639 = vmatmul.mubr.f32.gmra.mrb[0].mxu0 %v511
        %v640 = vpop.f32.mrb[0].mxu0
        %v641 = vadd.f32 %v542, %v640
        %v642 = vpop.f32.mrb[0].mxu0
        %643 = vmatprep.mubr.f32.mxu0 0.0
        %644 = vmatmul.mubr.f32.gmra.mrb[0].mxu0 %v512
        %v645 = vpop.f32.mrb[0].mxu0
        %v646 = vadd.f32 %v542, %v645
        %v647 = vpop.f32.mrb[0].mxu0
        %648 = vmatprep.mubr.f32.mxu0 0.0
        %649 = vmatmul.mubr.f32.gmra.mrb[0].mxu0 %v513
        %v650 = vpop.f32.mrb[0].mxu0
        %v651 = vadd.f32 %v542, %v650
        %v652 = vpop.f32.mrb[0].mxu0
        %653 = vmatprep.mubr.f32.mxu0 0.0
        %654 = vmatmul.mubr.f32.gmra.mrb[0].mxu0 %v514
        %v655 = vpop.f32.mrb[0].mxu0
        %v656 = vadd.f32 %v542, %v655
        %v657 = vpop.f32.mrb[0].mxu0
        %658 = vmatprep.mubr.f32.mxu0 0.0
        %659 = vmatmul.mubr.f32.gmra.mrb[0].mxu0 %v515
        %v660 = vpop.f32.mrb[0].mxu0
        %v661 = vadd.f32 %v542, %v660
        %v662 = vpop.f32.mrb[0].mxu0
        %663 = vmatprep.mubr.f32.mxu0 0.0
        %664 = vmatmul.mubr.f32.gmra.mrb[0].mxu0 %v516
        %v665 = vpop.f32.mrb[0].mxu0
        %v666 = vadd.f32 %v542, %v665
        %v667 = vpop.f32.mrb[0].mxu0
        %668 = vmatprep.mubr.f32.mxu0 0.0
        %669 = vmatmul.mubr.f32.gmra.mrb[0].mxu0 %v517
        %v670 = vpop.f32.mrb[0].mxu0
        %v671 = vadd.f32 %v542, %v670
        %v672 = vpop.f32.mrb[0].mxu0
        %673 = vmatprep.mubr.f32.mxu0 0.0
        %674 = vmatmul.mubr.f32.gmra.mrb[0].mxu0 %v518
        %v675 = vpop.f32.mrb[0].mxu0
        %v676 = vadd.f32 %v542, %v675
        %v677 = vpop.f32.mrb[0].mxu0
        %678 = vmatprep.mubr.f32.mxu0 0.0
        %679 = vmatmul.mubr.f32.gmra.mrb[0].mxu0 %v519
        %v680 = vpop.f32.mrb[0].mxu0
        %v681 = vadd.f32 %v542, %v680
        %v682 = vpop.f32.mrb[0].mxu0
        %683 = vmatprep.mubr.f32.mxu0 0.0
        %684 = vmatmul.mubr.f32.gmra.mrb[0].mxu0 %v520
        %v685 = vpop.f32.mrb[0].mxu0
        %v686 = vadd.f32 %v542, %v685
        %v687 = vpop.f32.mrb[0].mxu0
        %688 = vdwg.mxu0
        %v689 = vmax.f32 %v611, 0.0
        %v690 = vmax.f32 %v616, 0.0
        %v691 = vmax.f32 %v621, 0.0
        %v692 = vmax.f32 %v626, 0.0
        %v693 = vmax.f32 %v631, 0.0
        %v694 = vmax.f32 %v636, 0.0
        %v695 = vmax.f32 %v641, 0.0
        %v696 = vmax.f32 %v646, 0.0
        %v697 = vmax.f32 %v651, 0.0
        %v698 = vmax.f32 %v656, 0.0
        %v699 = vmax.f32 %v661, 0.0
        %v700 = vmax.f32 %v666, 0.0
        %v701 = vmax.f32 %v671, 0.0
        %v702 = vmax.f32 %v676, 0.0
        %v703 = vmax.f32 %v681, 0.0
        %v704 = vmax.f32 %v686, 0.0
        %v705 = vld [vmem:[%s5] sm:$0x1]
        %v706 = vld [vmem:[#allocation2] sm:$0x1]
        %708 = vset.pattern.permute.xlu0 0
        %709 = vperm.xlu0 %708, %v706
        %v710 = vpop.permute.xlu0 %709
        %v712 = vlaneseq
        %v713 = vshrl.u32 %v712, 7
        %v714 = vsub.s32 0, %v713
        %v715 = vrot.slane %v710, %v714
        %716 = vmatprep.subr.mxu0 0.0
        %717 = vmatpush1.xpose.msra.mxu0 %v689
        %718 = vmatprep.subr.mxu0 0.0
        %719 = vmatpush1.xpose.msra.mxu0 %v690
        %720 = vmatprep.subr.mxu0 0.0
        %721 = vmatpush1.xpose.msra.mxu0 %v691
        %722 = vmatprep.subr.mxu0 0.0
        %723 = vmatpush1.xpose.msra.mxu0 %v692
        %724 = vmatprep.subr.mxu0 0.0
        %725 = vmatpush1.xpose.msra.mxu0 %v693
        %726 = vmatprep.subr.mxu0 0.0
        %727 = vmatpush1.xpose.msra.mxu0 %v694
        %728 = vmatprep.subr.mxu0 0.0
        %729 = vmatpush1.xpose.msra.mxu0 %v695
        %730 = vmatprep.subr.mxu0 0.0
        %731 = vmatpush1.xpose.msra.mxu0 %v696
        %732 = vmatprep.subr.mxu0 0.0
        %733 = vmatpush1.xpose.msra.mxu0 %v697
        %734 = vmatprep.subr.mxu0 0.0
        %735 = vmatpush1.xpose.msra.mxu0 %v698
        %736 = vmatprep.subr.mxu0 0.0
        %737 = vmatpush1.xpose.msra.mxu0 %v699
        %738 = vmatprep.subr.mxu0 0.0
        %739 = vmatpush1.xpose.msra.mxu0 %v700
        %740 = vmatprep.subr.mxu0 0.0
        %741 = vmatpush1.xpose.msra.mxu0 %v701
        %742 = vmatprep.subr.mxu0 0.0
        %743 = vmatpush1.xpose.msra.mxu0 %v702
        %744 = vmatprep.subr.mxu0 0.0
        %745 = vmatpush1.xpose.msra.mxu0 %v703
        %746 = vmatprep.subr.mxu0 0.0
        %747 = vmatpush1.xpose.msra.mxu0 %v704
        %748 = vmatprep.subr.mxu0 0.0
        %749 = vmatpush1.xpose.msra.mxu0 0.0
        %750 = vmatprep.subr.mxu0 0.0
        %751 = vmatpush1.xpose.msra.mxu0 0.0
        %752 = vmatprep.subr.mxu0 0.0
        %753 = vmatpush1.xpose.msra.mxu0 0.0
        %754 = vmatprep.subr.mxu0 0.0
        %755 = vmatpush1.xpose.msra.mxu0 0.0
        %756 = vmatprep.subr.mxu0 0.0
        %757 = vmatpush1.xpose.msra.mxu0 0.0
        %758 = vmatprep.subr.mxu0 0.0
        %759 = vmatpush1.xpose.msra.mxu0 0.0
        %760 = vmatprep.subr.mxu0 0.0
        %761 = vmatpush1.xpose.msra.mxu0 0.0
        %762 = vmatprep.subr.mxu0 0.0
        %763 = vmatpush1.xpose.msra.mxu0 0.0
        %764 = vmatprep.subr.mxu0 0.0
        %765 = vmatpush1.xpose.msra.mxu0 0.0
        %766 = vmatprep.subr.mxu0 0.0
        %767 = vmatpush1.xpose.msra.mxu0 0.0
        %768 = vmatprep.subr.mxu0 0.0
        %769 = vmatpush1.xpose.msra.mxu0 0.0
        %770 = vmatprep.subr.mxu0 0.0
        %771 = vmatpush1.xpose.msra.mxu0 0.0
        %772 = vmatprep.subr.mxu0 0.0
        %773 = vmatpush1.xpose.msra.mxu0 0.0
        %774 = vmatprep.subr.mxu0 0.0
        %775 = vmatpush1.xpose.msra.mxu0 0.0
        %776 = vmatprep.subr.mxu0 0.0
        %777 = vmatpush1.xpose.msra.mxu0 0.0
        %778 = vmatprep.subr.mxu0 0.0
        %779 = vmatpush1.xpose.msra.mxu0 0.0
        %780 = vmatprep.mubr.f32.mxu0 0.0
        %781 = vmatmul.mubr.f32.gmra.mrb[0].mxu0 %v705
        %v782 = vpop.f32.mrb[0].mxu0
        %v783 = vadd.f32 %v715, %v782
        %v784 = vpop.f32.mrb[0].mxu0
        %785 = vdwg.mxu0
        %786 = vst [vmem:[%s273] sm:$0x1] %v783
        %s787 = sand.u32 %s183, 1
        %s788 = scalar_lea.sflag [#allocation4], %s787
        %s789 = sand.u32 %s183, 1
        %s790 = scalar_lea.vmem [#allocation3], %s789
        // Predicated region
        $region49: #{tpu_custom_call.1} parent=47 // pred_check
          %p791 = pneg %p193
        $region50: #{tpu_custom_call.1} parent=47 // pred_check_branch
          %793 = sbr.rel (%p791) target = $region52
        $region51: #{tpu_custom_call.1} parent=47 // pred_region
          %s795 = ssub.s32 16, 16
          %796 = vsyncadd %s788, %s795
          %s797 = smul.addr %s23, 16
          %s798 = scalar_lea.hbm %s7, %s797
          %s800 = sshll.u32 %s790, 4
          %s801 = int_to_ptr.vmem [resolvable:$true] %s800
          %803 = dma.vmem_to_hbm [thread:$0]  %s801, 16, %s798, %s788
        $region52: #{tpu_custom_call.1} parent=47 // pred_fallthru
          _
      $region48: #{tpu_custom_call.1} parent=5 // pred_fallthru
        _
      %p804 = scmp.le.s32.totalorder 2, %s18
      // Predicated region
      $region53: #{tpu_custom_call.1} parent=5 // pred_check
        %p805 = pneg %p804
      $region54: #{tpu_custom_call.1} parent=5 // pred_check_branch
        %807 = sbr.rel (%p805) target = $region56
      $region55: #{tpu_custom_call.1} parent=5 // pred_region
        %s808 = ssub.s32 %s18, 2
        // Predicated region
        $region57: #{tpu_custom_call.1} parent=55 // pred_check
          %p809 = pneg %p199
        $region58: #{tpu_custom_call.1} parent=55 // pred_check_branch
          %811 = sbr.rel (%p809) target = $region60
        $region59: #{tpu_custom_call.1} parent=55 // pred_region
          %s812 = sand.u32 %s184, 1
          %s813 = scalar_lea.sflag [#allocation4], %s812
          %s814 = sand.u32 %s184, 1
          %s815 = scalar_lea.vmem [#allocation3], %s814
          %816 = dma.done %s813, 16
        $region60: #{tpu_custom_call.1} parent=55 // pred_fallthru
          _
      $region56: #{tpu_custom_call.1} parent=5 // pred_fallthru
        _
    $region6: #{tpu_custom_call.1} parent=1 // loop_footer
      %s22 = sadd.s32 1, %s18
    $region7: #{tpu_custom_call.1} parent=1 // loop_footer_branch
      %17 = sbr.rel target = $region3
    $region8: #{tpu_custom_call.1} parent=1 // loop_exit
      _
    %817 = vsyncpa [#allocation4], 1
    %s818 = scalar_lea.sflag [#allocation4], 1
    %819 = vsyncpa %s818, 1

</llo_original>
